<compile_context>
chip_gen: v5e
topology: v5e:2x2
jax: 0.10.0
libtpu: 0.0.40
codegen_flags: <defaults>
</compile_context>

<pallas_src>
import jax
import jax.numpy as jnp
from jax.experimental import pallas as pl
from jax.experimental.pallas import tpu as pltpu


# ---------------------------------------------------------------------------
# Kernel
# ---------------------------------------------------------------------------
def actor_kernel(x_ref, w1_ref, b1_ref, w2_ref, b2_ref, w3_ref, b3_ref, o_ref):
    # layer 1: relu(x @ W1 + b1)   (bf16 operands, f32 accumulation)
    x = x_ref[...].astype(w1_ref.dtype)
    h = jnp.dot(x, w1_ref[...], preferred_element_type=jnp.float32)
    h = jnp.maximum(h + b1_ref[...], 0.0)
    # layer 2: relu(h @ W2 + b2)
    h = jnp.dot(h.astype(w2_ref.dtype), w2_ref[...],
                preferred_element_type=jnp.float32)
    h = jnp.maximum(h + b2_ref[...], 0.0)
    # layer 3: tanh(h @ W3 + b3) -- only actions_dim output lanes are produced
    h = jnp.dot(h.astype(w3_ref.dtype), w3_ref[...],
                preferred_element_type=jnp.float32)
    o_ref[...] = jnp.tanh(h + b3_ref[...]).astype(o_ref.dtype)


# ---------------------------------------------------------------------------
# Wrapper
# ---------------------------------------------------------------------------
def _round_up(n, m):
    return ((n + m - 1) // m) * m


def _ceil_div(a, b):
    return -(-a // b)


def actor_forward(x, params, *, max_tile_b=2048):
    """x: (B, states_dim) f32 (or bf16). params: dict from pad_and_cast_params.

    Returns (B, actions_dim) f32 actions in [-1, 1].
    """
    w1, b1 = params["w1"], params["b1"]
    w2, b2 = params["w2"], params["b2"]
    w3, b3 = params["w3"], params["b3"]

    B, S = x.shape
    H1p = w1.shape[1]
    H2p = w2.shape[1]
    A = w3.shape[1]          # unpadded actions_dim

    # Batch tiling (static Python ints):
    #   * tiny batches  -> one small tile (launch latency dominates anyway)
    #   * mid batches   -> even split into >= 2 grid steps (v7x megacore)
    #   * huge batches  -> max_tile_b tiles (amortize ~0.35us/step overhead)
    if B <= 64:
        tile_b = _round_up(max(B, 1), 8)
    elif B <= 2 * max_tile_b:
        tile_b = _round_up(_ceil_div(B, 2), 8)
    else:
        tile_b = max_tile_b
    grid = (_ceil_div(B, tile_b),)   # ragged last block handled by Pallas masking

    # Cost estimate for the XLA scheduler.
    flops = 2 * B * (S * H1p + H1p * H2p + H2p * A)
    transcendentals = B * A  # tanh
    bytes_accessed = (
        x.size * x.dtype.itemsize
        + sum(a.size * a.dtype.itemsize for a in (w1, b1, w2, b2, w3, b3))
        + B * A * 4
    )

    resident = lambda i: (0, 0)   # weights/biases stay put across grid steps

    return pl.pallas_call(
        actor_kernel,
        out_shape=jax.ShapeDtypeStruct((B, A), jnp.float32),
        grid=grid,
        in_specs=[
            pl.BlockSpec((tile_b, S), lambda i: (i, 0)),   # x: batch-tiled
            pl.BlockSpec(w1.shape, resident),
            pl.BlockSpec(b1.shape, resident),
            pl.BlockSpec(w2.shape, resident),
            pl.BlockSpec(b2.shape, resident),
            pl.BlockSpec(w3.shape, resident),
            pl.BlockSpec(b3.shape, resident),
        ],
        out_specs=pl.BlockSpec((tile_b, A), lambda i: (i, 0)),
        compiler_params=pltpu.CompilerParams(
            dimension_semantics=("parallel",)),
        cost_estimate=pl.CostEstimate(
            flops=flops,
            transcendentals=transcendentals,
            bytes_accessed=bytes_accessed),
    )(x, w1, b1, w2, b2, w3, b3)


# ---------------------------------------------------------------------------
# Parameter construction
# ---------------------------------------------------------------------------
def init_actor_params(key, states_dim, actions_dim, hidden_dim, hidden_dim1,
                      init_w=0.003):
    """f32, unpadded params mirroring PyTorch defaults (uniform +/- 1/sqrt(fan_in)),
    with linear3 re-initialized uniform(-init_w, init_w) as in the module.
    Weights are stored (in, out) == PyTorch weight.T."""
    k1, k2, k3, k4, k5, k6 = jax.random.split(key, 6)

    def u(k, shape, bound):
        return jax.random.uniform(k, shape, jnp.float32, -bound, bound)

    bnd1 = 1.0 / jnp.sqrt(states_dim)
    bnd2 = 1.0 / jnp.sqrt(hidden_dim)
    return {
        "w1": u(k1, (states_dim, hidden_dim), bnd1),
        "b1": u(k2, (1, hidden_dim), bnd1),
        "w2": u(k3, (hidden_dim, hidden_dim1), bnd2),
        "b2": u(k4, (1, hidden_dim1), bnd2),
        "w3": u(k5, (hidden_dim1, actions_dim), init_w),
        "b3": u(k6, (1, actions_dim), init_w),
    }


def pad_and_cast_params(p, lane=128):
    """Zero-pad hidden dims to lane multiples (inert through relu) and cast
    weights to bf16 for MXU-native matmuls. Biases stay f32 (f32 epilogue).
    The output dim of w3/b3 is left unpadded so the kernel only computes and
    writes actions_dim lanes.

    Note: on v6e/v7x with real hidden dims >= 128 (e.g. TD3's usual 256/400),
    lane=256 fills the 2x256 MXU columns; keep 128 for small hidden dims / v5e.
    """
    def pad2(a, rows, cols):
        return jnp.pad(a, ((0, rows - a.shape[0]), (0, cols - a.shape[1])))

    S, H1 = p["w1"].shape
    H2 = p["w2"].shape[1]
    A = p["w3"].shape[1]
    H1p = _round_up(H1, lane)
    H2p = _round_up(H2, lane)
    return {
        "w1": pad2(p["w1"], S, H1p).astype(jnp.bfloat16),
        "b1": pad2(p["b1"], 1, H1p),
        "w2": pad2(p["w2"], H1p, H2p).astype(jnp.bfloat16),
        "b2": pad2(p["b2"], 1, H2p),
        "w3": pad2(p["w3"], H2p, A).astype(jnp.bfloat16),   # rows only
        "b3": p["b3"],
    }


def actor_ref(x, p):
    """Pure-JAX f32 reference for correctness check (unpadded params)."""
    h = jax.nn.relu(x @ p["w1"] + p["b1"])
    h = jax.nn.relu(h @ p["w2"] + p["b2"])
    return jnp.tanh(h @ p["w3"] + p["b3"])


# ---------------------------------------------------------------------------
# Self-test
# ---------------------------------------------------------------------------
if __name__ == "__main__":
    states_dim, actions_dim = 8, 2
    hidden_dim, hidden_dim1 = 32, 32

    key = jax.random.PRNGKey(0)
    kx1, kx2, kp = jax.random.split(key, 3)

    params_f32 = init_actor_params(kp, states_dim, actions_dim,
                                   hidden_dim, hidden_dim1)
    params_knl = pad_and_cast_params(params_f32)

    fwd = jax.jit(actor_forward)

    # Case 1: tiny rollout-style batch (single small tile, ragged block masking).
    x_small = jax.random.normal(kx1, (4, states_dim), dtype=jnp.float32)
    out_small = jax.block_until_ready(fwd(x_small, params_knl))
    ref_small = actor_ref(x_small, params_f32)
    assert out_small.shape == (4, actions_dim)
    assert jnp.allclose(out_small, ref_small, atol=2e-2, rtol=2e-2), \
        "small-batch mismatch vs. JAX reference"

    # Case 2: mid-size batch exercising the even-split, multi-step grid path
    # (grid = 2, so both TensorCores are used on megacore parts).
    x_med = jax.random.normal(kx2, (200, states_dim), dtype=jnp.float32)
    out_med = jax.block_until_ready(fwd(x_med, params_knl))
    ref_med = actor_ref(x_med, params_f32)
    assert out_med.shape == (200, actions_dim)
    assert jnp.allclose(out_med, ref_med, atol=2e-2, rtol=2e-2), \
        "mid-batch mismatch vs. JAX reference"

    print("KERNEL_OK")
</pallas_src>

<mosaic_0001>
module attributes {stable_mosaic.version = 11 : i64} {
  func.func @actor_kernel(%arg0: i32, %arg1: memref<8x8xf32, #tpu.memory_space<vmem>>, %arg2: memref<8x128xbf16, #tpu.memory_space<vmem>>, %arg3: memref<1x128xf32, #tpu.memory_space<vmem>>, %arg4: memref<128x128xbf16, #tpu.memory_space<vmem>>, %arg5: memref<1x128xf32, #tpu.memory_space<vmem>>, %arg6: memref<128x2xbf16, #tpu.memory_space<vmem>>, %arg7: memref<1x2xf32, #tpu.memory_space<vmem>>, %arg8: memref<8x2xf32, #tpu.memory_space<vmem>>) attributes {dimension_semantics = [#tpu.dimension_semantics<parallel>], iteration_bounds = array<i64: 1>, scalar_prefetch = 0 : i64, scratch_operands = 0 : i64, tpu.core_type = #tpu.core_type<tc>, window_params = [{transform_indices = @transform_0, window_bounds = array<i64: 8, 8>}, {pipeline_mode = #tpu.pipeline_mode<synchronous>, transform_indices = @transform_1, window_bounds = array<i64: 8, 128>}, {pipeline_mode = #tpu.pipeline_mode<synchronous>, transform_indices = @transform_2, window_bounds = array<i64: 1, 128>}, {pipeline_mode = #tpu.pipeline_mode<synchronous>, transform_indices = @transform_3, window_bounds = array<i64: 128, 128>}, {pipeline_mode = #tpu.pipeline_mode<synchronous>, transform_indices = @transform_4, window_bounds = array<i64: 1, 128>}, {pipeline_mode = #tpu.pipeline_mode<synchronous>, transform_indices = @transform_5, window_bounds = array<i64: 128, 2>}, {pipeline_mode = #tpu.pipeline_mode<synchronous>, transform_indices = @transform_6, window_bounds = array<i64: 1, 2>}, {transform_indices = @transform_7, window_bounds = array<i64: 8, 2>}]} {
    %c0 = arith.constant 0 : index
    %c0_0 = arith.constant 0 : index
    %0 = vector.load %arg1[%c0, %c0_0] : memref<8x8xf32, #tpu.memory_space<vmem>>, vector<8x8xf32>
    %1 = arith.truncf %0 : vector<8x8xf32> to vector<8x8xbf16>
    %c0_1 = arith.constant 0 : index
    %c0_2 = arith.constant 0 : index
    %2 = vector.load %arg2[%c0_1, %c0_2] : memref<8x128xbf16, #tpu.memory_space<vmem>>, vector<8x128xbf16>
    %cst = arith.constant dense<0.000000e+00> : vector<8x128xf32>
    %3 = tpu.matmul %1, %2, %cst {dimension_numbers = #tpu.dot_dimension_numbers<[1], [0], [0], [1], [0, 0, 1, 1], [], []>} : vector<8x8xbf16>, vector<8x128xbf16>, vector<8x128xf32> -> vector<8x128xf32>
    %c0_3 = arith.constant 0 : index
    %c0_4 = arith.constant 0 : index
    %4 = vector.load %arg3[%c0_3, %c0_4] : memref<1x128xf32, #tpu.memory_space<vmem>>, vector<1x128xf32>
    %5 = vector.broadcast %4 : vector<1x128xf32> to vector<8x128xf32>
    %6 = arith.addf %3, %5 : vector<8x128xf32>
    %cst_5 = arith.constant 0.000000e+00 : f32
    %7 = vector.broadcast %cst_5 : f32 to vector<8x128xf32>
    %8 = arith.maximumf %6, %7 : vector<8x128xf32>
    %9 = arith.truncf %8 : vector<8x128xf32> to vector<8x128xbf16>
    %c0_6 = arith.constant 0 : index
    %c0_7 = arith.constant 0 : index
    %10 = vector.load %arg4[%c0_6, %c0_7] : memref<128x128xbf16, #tpu.memory_space<vmem>>, vector<128x128xbf16>
    %cst_8 = arith.constant dense<0.000000e+00> : vector<8x128xf32>
    %11 = tpu.matmul %9, %10, %cst_8 {dimension_numbers = #tpu.dot_dimension_numbers<[1], [0], [0], [1], [0, 0, 1, 1], [], []>} : vector<8x128xbf16>, vector<128x128xbf16>, vector<8x128xf32> -> vector<8x128xf32>
    %c0_9 = arith.constant 0 : index
    %c0_10 = arith.constant 0 : index
    %12 = vector.load %arg5[%c0_9, %c0_10] : memref<1x128xf32, #tpu.memory_space<vmem>>, vector<1x128xf32>
    %13 = vector.broadcast %12 : vector<1x128xf32> to vector<8x128xf32>
    %14 = arith.addf %11, %13 : vector<8x128xf32>
    %cst_11 = arith.constant 0.000000e+00 : f32
    %15 = vector.broadcast %cst_11 : f32 to vector<8x128xf32>
    %16 = arith.maximumf %14, %15 : vector<8x128xf32>
    %17 = arith.truncf %16 : vector<8x128xf32> to vector<8x128xbf16>
    %c0_12 = arith.constant 0 : index
    %c0_13 = arith.constant 0 : index
    %18 = vector.load %arg6[%c0_12, %c0_13] : memref<128x2xbf16, #tpu.memory_space<vmem>>, vector<128x2xbf16>
    %cst_14 = arith.constant dense<0.000000e+00> : vector<8x2xf32>
    %19 = tpu.matmul %17, %18, %cst_14 {dimension_numbers = #tpu.dot_dimension_numbers<[1], [0], [0], [1], [0, 0, 1, 1], [], []>} : vector<8x128xbf16>, vector<128x2xbf16>, vector<8x2xf32> -> vector<8x2xf32>
    %c0_15 = arith.constant 0 : index
    %c0_16 = arith.constant 0 : index
    %20 = vector.load %arg7[%c0_15, %c0_16] : memref<1x2xf32, #tpu.memory_space<vmem>>, vector<1x2xf32>
    %21 = vector.broadcast %20 : vector<1x2xf32> to vector<8x2xf32>
    %22 = arith.addf %19, %21 : vector<8x2xf32>
    %23 = math.tanh %22 : vector<8x2xf32>
    %c0_17 = arith.constant 0 : index
    %c0_18 = arith.constant 0 : index
    %24 = vector.load %arg8[%c0_17, %c0_18] : memref<8x2xf32, #tpu.memory_space<vmem>>, vector<8x2xf32>
    tpu.vector_store %arg8[%c0_17, %c0_18], %23 {strides = array<i32>} : memref<8x2xf32, #tpu.memory_space<vmem>>, vector<8x2xf32>,
    return
  }
  func.func @transform_0(%arg0: i32) -> (i32, i32) {
    %c0_i32 = arith.constant 0 : i32
    %c0_i32_0 = arith.constant 0 : i32
    return %arg0, %c0_i32 : i32, i32
  }
  func.func @transform_1(%arg0: i32) -> (i32, i32) {
    %c0_i32 = arith.constant 0 : i32
    %c0_i32_0 = arith.constant 0 : i32
    %c0_i32_1 = arith.constant 0 : i32
    return %c0_i32, %c0_i32_0 : i32, i32
  }
  func.func @transform_2(%arg0: i32) -> (i32, i32) {
    %c0_i32 = arith.constant 0 : i32
    %c0_i32_0 = arith.constant 0 : i32
    %c0_i32_1 = arith.constant 0 : i32
    return %c0_i32, %c0_i32_0 : i32, i32
  }
  func.func @transform_3(%arg0: i32) -> (i32, i32) {
    %c0_i32 = arith.constant 0 : i32
    %c0_i32_0 = arith.constant 0 : i32
    %c0_i32_1 = arith.constant 0 : i32
    return %c0_i32, %c0_i32_0 : i32, i32
  }
  func.func @transform_4(%arg0: i32) -> (i32, i32) {
    %c0_i32 = arith.constant 0 : i32
    %c0_i32_0 = arith.constant 0 : i32
    %c0_i32_1 = arith.constant 0 : i32
    return %c0_i32, %c0_i32_0 : i32, i32
  }
  func.func @transform_5(%arg0: i32) -> (i32, i32) {
    %c0_i32 = arith.constant 0 : i32
    %c0_i32_0 = arith.constant 0 : i32
    %c0_i32_1 = arith.constant 0 : i32
    return %c0_i32, %c0_i32_0 : i32, i32
  }
  func.func @transform_6(%arg0: i32) -> (i32, i32) {
    %c0_i32 = arith.constant 0 : i32
    %c0_i32_0 = arith.constant 0 : i32
    %c0_i32_1 = arith.constant 0 : i32
    return %c0_i32, %c0_i32_0 : i32, i32
  }
  func.func @transform_7(%arg0: i32) -> (i32, i32) {
    %c0_i32 = arith.constant 0 : i32
    %c0_i32_0 = arith.constant 0 : i32
    return %arg0, %c0_i32 : i32, i32
  }
}

</mosaic_0001>

<llo_original>
// kernel: actor_forward.1
$region0: #{actor_forward.1}
  #allocation0 [shape = 'u32[]', space=smem, size = 0x4, offset = 0x4, fixed_abs, tag = 'smem constant byte address 0x4 - core index']
  #allocation1 [shape = 'u32[72,128]{1,0:T(1,128)}', space=vmem, size = 0x9000, scoped, tag = 'internal scratch']
  %s0 = inlined_call_operand.vmem [shape: f32[4,8], index: 0, kind: input, shape index: {}]
  %s1 = inlined_call_operand.hbm [shape: bf16[8,128], index: 1, kind: input, shape index: {}]
  %s2 = inlined_call_operand.vmem [shape: f32[1,128], index: 2, kind: input, shape index: {}]
  %s3 = inlined_call_operand.vmem [shape: bf16[128,128], index: 3, kind: input, shape index: {}]
  %s4 = inlined_call_operand.hbm [shape: f32[1,128], index: 4, kind: input, shape index: {}]
  %s5 = inlined_call_operand.vmem [shape: bf16[128,2], index: 5, kind: input, shape index: {}]
  %s6 = inlined_call_operand.hbm [shape: f32[1,2], index: 6, kind: input, shape index: {}]
  %s7 = inlined_call_operand.vmem [shape: f32[4,2], index: 7, kind: output, shape index: {}]
  %s8 = sld [smem:[#allocation0]]
  $region80: #{actor_forward.1} parent=0
    _
  %s10 = ssub.s32 1, %s8
  %s11 = scalar_select 0, %s10, %s8
  $region1: #{actor_forward.1} parent=0
    #allocation2 [shape = 'u8[2048]{0}', space=vmem, size = 0x800, scoped, tag = 'input window, operand 1, single buffered']
    #allocation3 [shape = 's32[1]{0}', space=sflag, size = 0x4, scoped, tag = 'scoped memory for actor_forward.1']
    #allocation4 [shape = 'u8[512]{0}', space=vmem, size = 0x400, scoped, tag = 'input window, operand 4, single buffered']
    #allocation5 [shape = 's32[1]{0}', space=sflag, size = 0x4, scoped, tag = 'scoped memory for actor_forward.1']
    #allocation6 [shape = 'u8[512]{0}', space=vmem, size = 0x400, scoped, tag = 'input window, operand 6, single buffered']
    #allocation7 [shape = 'u8[4096]{0}', space=vmem, size = 0x1000, scoped, tag = 'output window, operand 0, single buffered']
    %12 = vsyncpa [#allocation3], 0
    %13 = vsyncpa [#allocation5], 0
    // Predicated region
    $region2: #{actor_forward.1} parent=1 // pred_check
      _
    $region3: #{actor_forward.1} parent=1 // pred_check_branch
      %15 = sbr.rel (0) target = $region5
    $region4: #{actor_forward.1} parent=1 // pred_region
      _
    $region5: #{actor_forward.1} parent=1 // pred_fallthru
      _
    // Predicated region
    $region6: #{actor_forward.1} parent=1 // pred_check
      _
    $region7: #{actor_forward.1} parent=1 // pred_check_branch
      %17 = sbr.rel (0) target = $region9
    $region8: #{actor_forward.1} parent=1 // pred_region
      %19 = vsyncadd [#allocation3], 0
      %s21 = sshll.u32 %s1, 4
      %s22 = int_to_ptr.hbm [resolvable:$true] %s21
      %s23 = sshll.u32 [#allocation2], 4
      %s24 = int_to_ptr.vmem [resolvable:$true] %s23
      %26 = dma.hbm_to_vmem [thread:$0]  %s22, 64, %s24, [#allocation3]
    $region9: #{actor_forward.1} parent=1 // pred_fallthru
      _
    // Predicated region
    $region10: #{actor_forward.1} parent=1 // pred_check
      _
    $region11: #{actor_forward.1} parent=1 // pred_check_branch
      %28 = sbr.rel (0) target = $region13
    $region12: #{actor_forward.1} parent=1 // pred_region
      _
    $region13: #{actor_forward.1} parent=1 // pred_fallthru
      _
    // Predicated region
    $region14: #{actor_forward.1} parent=1 // pred_check
      _
    $region15: #{actor_forward.1} parent=1 // pred_check_branch
      %30 = sbr.rel (0) target = $region17
    $region16: #{actor_forward.1} parent=1 // pred_region
      _
    $region17: #{actor_forward.1} parent=1 // pred_fallthru
      _
    // Predicated region
    $region18: #{actor_forward.1} parent=1 // pred_check
      _
    $region19: #{actor_forward.1} parent=1 // pred_check_branch
      %32 = sbr.rel (0) target = $region21
    $region20: #{actor_forward.1} parent=1 // pred_region
      %34 = vsyncadd [#allocation5], 0
      %s36 = sshll.u32 %s4, 4
      %s37 = int_to_ptr.hbm [resolvable:$true] %s36
      %s38 = sshll.u32 [#allocation4], 4
      %s39 = int_to_ptr.vmem [resolvable:$true] %s38
      %41 = dma.hbm_to_vmem [thread:$0]  %s37, 16, %s39, [#allocation5]
    $region21: #{actor_forward.1} parent=1 // pred_fallthru
      _
    // Predicated region
    $region22: #{actor_forward.1} parent=1 // pred_check
      _
    $region23: #{actor_forward.1} parent=1 // pred_check_branch
      %43 = sbr.rel (0) target = $region25
    $region24: #{actor_forward.1} parent=1 // pred_region
      _
    $region25: #{actor_forward.1} parent=1 // pred_fallthru
      _
    // Predicated region
    $region26: #{actor_forward.1} parent=1 // pred_check
      _
    $region27: #{actor_forward.1} parent=1 // pred_check_branch
      %45 = sbr.rel (0) target = $region29
    $region28: #{actor_forward.1} parent=1 // pred_region
      %47 = vsyncadd [#allocation5], 0
      %s49 = sshll.u32 %s6, 4
      %s50 = int_to_ptr.hbm [resolvable:$true] %s49
      %s51 = sshll.u32 [#allocation6], 4
      %s52 = int_to_ptr.vmem [resolvable:$true] %s51
      %54 = dma.hbm_to_vmem [thread:$0]  %s50, 16, %s52, [#allocation5]
    $region29: #{actor_forward.1} parent=1 // pred_fallthru
      _
    // Predicated region
    $region30: #{actor_forward.1} parent=1 // pred_check
      _
    $region31: #{actor_forward.1} parent=1 // pred_check_branch
      %56 = sbr.rel (0) target = $region33
    $region32: #{actor_forward.1} parent=1 // pred_region
      %58 = dma.done [#allocation3], 64
    $region33: #{actor_forward.1} parent=1 // pred_fallthru
      _
    // Predicated region
    $region34: #{actor_forward.1} parent=1 // pred_check
      _
    $region35: #{actor_forward.1} parent=1 // pred_check_branch
      %60 = sbr.rel (0) target = $region37
    $region36: #{actor_forward.1} parent=1 // pred_region
      %62 = dma.done [#allocation5], 16
    $region37: #{actor_forward.1} parent=1 // pred_fallthru
      _
    // Predicated region
    $region38: #{actor_forward.1} parent=1 // pred_check
      _
    $region39: #{actor_forward.1} parent=1 // pred_check_branch
      %64 = sbr.rel (0) target = $region41
    $region40: #{actor_forward.1} parent=1 // pred_region
      %66 = dma.done [#allocation5], 16
    $region41: #{actor_forward.1} parent=1 // pred_fallthru
      _
    %v68 = vld [vmem:[%s0] sm:$0xff]
    %v69 = vpack.c.bf16 %v68, %v68
    %v70 = vld [vmem:[#allocation2] sm:$0xf]
    %v71 = vld [vmem:[%s2] sm:$0x1]
    %v73 = vperm.slane %v71, 0
    %vm75 = vcmask 64512
    %v77 = vsel %vm75, %v69, 0
    %vm79 = vcmask 1043456
    %v81 = vsel %vm79, %v70, 0
    %83 = vmatpush.bf16.msra.mxu0 0
    %84 = vmatpush.bf16.msra.mxu0 0
    %85 = vmatpush.bf16.msra.mxu0 0
    %86 = vmatpush.bf16.msra.mxu0 0
    %87 = vmatpush.bf16.msra.mxu0 0
    %88 = vmatpush.bf16.msra.mxu0 0
    %89 = vmatpush.bf16.msra.mxu0 0
    %90 = vmatpush.bf16.msra.mxu0 %v81
    %91 = vmatmul.bf16.gmra.mxu0 %v77
    %v92 = vpop.f32.mrf.mxu0
    %v93 = vadd.f32 %v73, %v92
    %v94 = vpop.f32.mrf.mxu0
    %95 = vdwg.mxu0
    %v96 = vmax.f32 %v93, 0.0
    %v97 = vpack.c.bf16 %v96, %v96
    %v98 = vld [vmem:[%s3] sm:$0xf]
    %v99 = vld [vmem:[%s3 + $0x4] sm:$0xf]
    %v100 = vld [vmem:[%s3 + $0x8] sm:$0xf]
    %v101 = vld [vmem:[%s3 + $0xc] sm:$0xf]
    %v102 = vld [vmem:[%s3 + $0x10] sm:$0xf]
    %v103 = vld [vmem:[%s3 + $0x14] sm:$0xf]
    %v104 = vld [vmem:[%s3 + $0x18] sm:$0xf]
    %v105 = vld [vmem:[%s3 + $0x1c] sm:$0xf]
    %v106 = vld [vmem:[%s3 + $0x20] sm:$0xf]
    %v107 = vld [vmem:[%s3 + $0x24] sm:$0xf]
    %v108 = vld [vmem:[%s3 + $0x28] sm:$0xf]
    %v109 = vld [vmem:[%s3 + $0x2c] sm:$0xf]
    %v110 = vld [vmem:[%s3 + $0x30] sm:$0xf]
    %v111 = vld [vmem:[%s3 + $0x34] sm:$0xf]
    %v112 = vld [vmem:[%s3 + $0x38] sm:$0xf]
    %v113 = vld [vmem:[%s3 + $0x3c] sm:$0xf]
    %v114 = vld [vmem:[#allocation4] sm:$0x1]
    %v116 = vperm.slane %v114, 0
    %v134 = vunpack.c.l.b16 %v98
    %v135 = vunpack.c.l.b16 %v99
    %v136 = vunpack.c.l.b16 %v100
    %v137 = vunpack.c.l.b16 %v101
    %v138 = vunpack.c.l.b16 %v102
    %v139 = vunpack.c.l.b16 %v103
    %v140 = vunpack.c.l.b16 %v104
    %v141 = vunpack.c.l.b16 %v105
    %v142 = vunpack.c.l.b16 %v106
    %v143 = vunpack.c.l.b16 %v107
    %v144 = vunpack.c.l.b16 %v108
    %v145 = vunpack.c.l.b16 %v109
    %v146 = vunpack.c.l.b16 %v110
    %v147 = vunpack.c.l.b16 %v111
    %v148 = vunpack.c.l.b16 %v112
    %v149 = vunpack.c.l.b16 %v113
    %v150 = vpack.c.b16 %v135, %v134
    %v151 = vpack.c.b16 %v137, %v136
    %v152 = vpack.c.b16 %v139, %v138
    %v153 = vpack.c.b16 %v141, %v140
    %v154 = vpack.c.b16 %v143, %v142
    %v155 = vpack.c.b16 %v145, %v144
    %v156 = vpack.c.b16 %v147, %v146
    %v157 = vpack.c.b16 %v149, %v148
    %166 = vmatpush.bf16.msra.mxu0 %v157
    %167 = vmatpush.bf16.msra.mxu0 %v156
    %168 = vmatpush.bf16.msra.mxu0 %v155
    %169 = vmatpush.bf16.msra.mxu0 %v154
    %170 = vmatpush.bf16.msra.mxu0 %v153
    %171 = vmatpush.bf16.msra.mxu0 %v152
    %172 = vmatpush.bf16.msra.mxu0 %v151
    %173 = vmatpush.bf16.msra.mxu0 %v150
    %174 = vmatmul.bf16.gmra.mxu0 %v97
    %v175 = vpop.f32.mrf.mxu0
    %v176 = vadd.f32 %v116, %v175
    %v177 = vpop.f32.mrf.mxu0
    %178 = vdwg.mxu0
    %v179 = vmax.f32 %v176, 0.0
    %v180 = vpack.c.bf16 %v179, %v179
    %v181 = vld [vmem:[%s5] sm:$0xf]
    %v182 = vld [vmem:[%s5 + $0x4] sm:$0xf]
    %v183 = vld [vmem:[%s5 + $0x8] sm:$0xf]
    %v184 = vld [vmem:[%s5 + $0xc] sm:$0xf]
    %v185 = vld [vmem:[%s5 + $0x10] sm:$0xf]
    %v186 = vld [vmem:[%s5 + $0x14] sm:$0xf]
    %v187 = vld [vmem:[%s5 + $0x18] sm:$0xf]
    %v188 = vld [vmem:[%s5 + $0x1c] sm:$0xf]
    %v189 = vld [vmem:[%s5 + $0x20] sm:$0xf]
    %v190 = vld [vmem:[%s5 + $0x24] sm:$0xf]
    %v191 = vld [vmem:[%s5 + $0x28] sm:$0xf]
    %v192 = vld [vmem:[%s5 + $0x2c] sm:$0xf]
    %v193 = vld [vmem:[%s5 + $0x30] sm:$0xf]
    %v194 = vld [vmem:[%s5 + $0x34] sm:$0xf]
    %v195 = vld [vmem:[%s5 + $0x38] sm:$0xf]
    %v196 = vld [vmem:[%s5 + $0x3c] sm:$0xf]
    %v197 = vld [vmem:[#allocation6] sm:$0x1]
    %v199 = vperm.slane %v197, 0
    %v217 = vunpack.c.l.b16 %v181
    %v218 = vunpack.c.l.b16 %v182
    %v219 = vunpack.c.l.b16 %v183
    %v220 = vunpack.c.l.b16 %v184
    %v221 = vunpack.c.l.b16 %v185
    %v222 = vunpack.c.l.b16 %v186
    %v223 = vunpack.c.l.b16 %v187
    %v224 = vunpack.c.l.b16 %v188
    %v225 = vunpack.c.l.b16 %v189
    %v226 = vunpack.c.l.b16 %v190
    %v227 = vunpack.c.l.b16 %v191
    %v228 = vunpack.c.l.b16 %v192
    %v229 = vunpack.c.l.b16 %v193
    %v230 = vunpack.c.l.b16 %v194
    %v231 = vunpack.c.l.b16 %v195
    %v232 = vunpack.c.l.b16 %v196
    %v233 = vpack.c.b16 %v218, %v217
    %v234 = vpack.c.b16 %v220, %v219
    %v235 = vpack.c.b16 %v222, %v221
    %v236 = vpack.c.b16 %v224, %v223
    %v237 = vpack.c.b16 %v226, %v225
    %v238 = vpack.c.b16 %v228, %v227
    %v239 = vpack.c.b16 %v230, %v229
    %v240 = vpack.c.b16 %v232, %v231
    %249 = vmatpush.bf16.msra.mxu0 %v240
    %250 = vmatpush.bf16.msra.mxu0 %v239
    %251 = vmatpush.bf16.msra.mxu0 %v238
    %252 = vmatpush.bf16.msra.mxu0 %v237
    %253 = vmatpush.bf16.msra.mxu0 %v236
    %254 = vmatpush.bf16.msra.mxu0 %v235
    %255 = vmatpush.bf16.msra.mxu0 %v234
    %256 = vmatpush.bf16.msra.mxu0 %v233
    %257 = vmatmul.bf16.gmra.mxu0 %v180
    %v258 = vpop.f32.mrf.mxu0
    %v259 = vadd.f32 %v199, %v258
    %v260 = vpop.f32.mrf.mxu0
    %261 = vdwg.mxu0
    %v262 = vtanh.pop %v259
    %vm263 = vcmask 15360
    %264 = vst.msk [vmem:[#allocation7] sm:$0xff] %vm263, %v262
    // Predicated region
    $region42: #{actor_forward.1} parent=1 // pred_check
      _
    $region43: #{actor_forward.1} parent=1 // pred_check_branch
      %266 = sbr.rel (0) target = $region45
    $region44: #{actor_forward.1} parent=1 // pred_region
      // Predicated region
      $region46: #{actor_forward.1} parent=44 // pred_check
        _
      $region47: #{actor_forward.1} parent=44 // pred_check_branch
        %268 = sbr.rel (0) target = $region49
      $region48: #{actor_forward.1} parent=44 // pred_region
        // Predicated region
        $region50: #{actor_forward.1} parent=48 // pred_check
          _
        $region51: #{actor_forward.1} parent=48 // pred_check_branch
          %270 = sbr.rel target = $region53
        $region52: #{actor_forward.1} parent=48 // pred_region
          // Predicated region
          $region65: #{actor_forward.1} parent=52 // pred_check
            _
          $region66: #{actor_forward.1} parent=52 // pred_check_branch
            %286 = sbr.rel (0) target = $region68
          $region67: #{actor_forward.1} parent=52 // pred_region
            %s288 = ssub.s32 16, 1
            loop: start=0, step=1, limit=1
            $region69: #{actor_forward.1} parent=67 // loop_pre_header
              _
            $region70: #{actor_forward.1} parent=67 // loop_header
              %s290 = sphi 0, %s294
              %p291 = scmp.ge.s32.totalorder %s290, 1
              %s295 = sphi [#allocation7], [#allocation7]
              %s296 = sphi %s7, %s7
            $region71: #{actor_forward.1} parent=67 // loop_header_branch
              %293 = sbr.rel (%p291) target = $region75
            $region72: #{actor_forward.1} parent=67 // loop_body
              %v297 = vld [vmem:[%s295] sm:%s288]
              %298 = vst [vmem:[%s296] sm:%s288] %v297
            $region73: #{actor_forward.1} parent=67 // loop_footer
              %s294 = sadd.s32 1, %s290
            $region74: #{actor_forward.1} parent=67 // loop_footer_branch
              %289 = sbr.rel target = $region70
            $region75: #{actor_forward.1} parent=67 // loop_exit
              _
          $region68: #{actor_forward.1} parent=52 // pred_fallthru
            _
        $region53: #{actor_forward.1} parent=48 // pred_fallthru
          _
        // Predicated region
        $region54: #{actor_forward.1} parent=48 // pred_check
          _
        $region55: #{actor_forward.1} parent=48 // pred_check_branch
          %272 = sbr.rel (0) target = $region57
        $region56: #{actor_forward.1} parent=48 // pred_region
          %s274 = ssub.s32 16, 1
          loop: start=0, step=1, limit=1
          $region58: #{actor_forward.1} parent=56 // loop_pre_header
            _
          $region59: #{actor_forward.1} parent=56 // loop_header
            %s276 = sphi 0, %s280
            %p277 = scmp.ge.s32.totalorder %s276, 1
            %s281 = sphi [#allocation7], [#allocation7]
            %s282 = sphi %s7, %s7
          $region60: #{actor_forward.1} parent=56 // loop_header_branch
            %279 = sbr.rel (%p277) target = $region64
          $region61: #{actor_forward.1} parent=56 // loop_body
            %v283 = vld [vmem:[%s281] sm:%s274]
            %284 = vst [vmem:[%s282] sm:%s274] %v283
          $region62: #{actor_forward.1} parent=56 // loop_footer
            %s280 = sadd.s32 1, %s276
          $region63: #{actor_forward.1} parent=56 // loop_footer_branch
            %275 = sbr.rel target = $region59
          $region64: #{actor_forward.1} parent=56 // loop_exit
            _
        $region57: #{actor_forward.1} parent=48 // pred_fallthru
          _
      $region49: #{actor_forward.1} parent=44 // pred_fallthru
        _
      %299 = vnop
    $region45: #{actor_forward.1} parent=1 // pred_fallthru
      _
    // Predicated region
    $region76: #{actor_forward.1} parent=1 // pred_check
      _
    $region77: #{actor_forward.1} parent=1 // pred_check_branch
      %301 = sbr.rel (0) target = $region79
    $region78: #{actor_forward.1} parent=1 // pred_region
      _
    $region79: #{actor_forward.1} parent=1 // pred_fallthru
      _
    %302 = vsyncpa [#allocation3], 1
    %303 = vsyncpa [#allocation5], 1

</llo_original>
